<compile_context>
chip_gen: v6e
topology: v6e:2x2x1
jax: 0.10.0
libtpu: 0.0.40
codegen_flags: <defaults>
</compile_context>

<pallas_src>
import functools

import jax
import jax.numpy as jnp
from jax.experimental import pallas as pl
from jax.experimental.pallas import tpu as pltpu


def _make_kernel(filter_sizes, Bt, S, V, F):
    """Builds the fused kernel for one batch block of Bt rows."""
    R = Bt * S
    C = sum(filter_sizes) * F          # total conv columns (all taps, all branches)

    def kernel(idx_ref, tw_ref, bias_ref, linw_ref, linb_ref, out_ref):
        cdt = tw_ref.dtype             # MXU operand dtype (bf16 fast / f32 exact)

        # 1) One-hot of the token ids (lane-dense (Bt, S) index block).
        #    Embedding gather + every (filter_size, tap) conv block are fused
        #    into a SINGLE MXU matmul against the pre-folded table:
        #        y = onehot @ (embeddings @ W_cat)        (R, C), f32 accum
        #    The mask is built/reshaped in f32 (S-sublane merge is a no-op for
        #    4-byte types) and cast to the MXU operand dtype afterwards.
        # TODO(synk): for a large vocabulary, replace the one-hot matmul with a
        # scalar-prefetched / DMA row gather from a pl.ANY HBM table.
        idx = idx_ref[...]                                            # (Bt, S) i32
        iota_v = jax.lax.broadcasted_iota(jnp.int32, (Bt, S, V), 2)
        onehot = (iota_v == idx[:, :, None]).astype(jnp.float32)      # (Bt, S, V)
        onehot = onehot.reshape(R, V).astype(cdt)                     # (R, V)
        y = jnp.dot(onehot, tw_ref[...],
                    preferred_element_type=jnp.float32)               # (R, C) f32
        y = y.reshape(Bt, S, C)

        # 2) Shifted adds realize each conv branch, max-pool over the valid
        #    positions, then bias + ReLU AFTER the pool (exact: bias constant
        #    over the pooled axis, ReLU monotone).
        # TODO(synk): Dropout treated as identity (eval / deterministic mode).
        pooled_parts = []
        col = 0
        for i, fs in enumerate(filter_sizes):
            L = S - fs + 1
            conv = y[:, 0:L, col * F:(col + 1) * F]                   # tap k = 0
            for k in range(1, fs):                                    # static
                conv = conv + y[:, k:k + L, (col + k) * F:(col + k + 1) * F]
            col += fs
            pooled = jnp.max(conv, axis=1)                            # (Bt, F) f32
            pooled_parts.append(
                jnp.maximum(pooled + bias_ref[pl.ds(i, 1), :], 0.0))

        # 3) One small MXU matmul for the whole Linear: lane-concat of the
        #    pooled blocks fits in a single vreg; the output columns are
        #    zero-padded to a lane-dense 128 so the store is an unmasked vst.
        cat = jnp.concatenate(pooled_parts, axis=-1)                  # (Bt, n_conv*F)
        out_ref[...] = (jnp.dot(cat, linw_ref[...],
                                preferred_element_type=jnp.float32)
                        + linb_ref[...])

    return kernel


def _num_tensorcores():
    """Best-effort TensorCores-per-chip (grid splitting only pays off >= 2)."""
    try:
        kind = jax.devices()[0].device_kind.lower()
    except Exception:
        return 1
    if "lite" in kind or "v5e" in kind or "v6e" in kind:
        return 1
    if any(tag in kind for tag in ("v4", "v5p", "v7", "7x")):
        return 2
    return 1


def _block_bytes(bt, S, V, C, n_feat, o_pad, operand_bytes):
    """Loose per-grid-step VMEM working-set estimate (intermediates + blocks)."""
    r = bt * S
    return int(r * V * 4 + r * V * operand_bytes   # one-hot (f32 build + cast)
               + 2 * r * C * 4                     # y (R, C) + (Bt, S, C) view
               + 2 * bt * n_feat * 4               # conv / pooled temporaries
               + 2 * bt * o_pad * 4                # output block (double-buffered)
               + 2 * bt * 128 * 4)                 # index block (lane-padded, dbl)


def _pick_block_batch(B, S, V, C, n_feat, o_pad, operand_bytes, n_cores,
                      vmem_budget=12 << 20):
    """Largest sublane-aligned batch block whose working set fits the budget.

    On single-TensorCore chips (v5e/v6e) the grid is a serial loop, so one big
    block minimizes per-step overhead; on 2-core chips (v7x/v4/v5p) prefer an
    even number of blocks so both cores get work.
    """
    # TODO(synk): no ragged/padded-batch path; B must be divisible by Bt.
    cands = sorted({d for d in range(8, B + 1, 8) if B % d == 0} | {B},
                   reverse=True)
    fitting = [d for d in cands
               if _block_bytes(d, S, V, C, n_feat, o_pad, operand_bytes)
               <= vmem_budget]
    if not fitting:
        fitting = [min(cands, key=lambda d: _block_bytes(
            d, S, V, C, n_feat, o_pad, operand_bytes))]
    if n_cores >= 2:
        for d in fitting:
            nb = B // d
            if nb >= 2 and nb % n_cores == 0:
                return d
    return fitting[0]


@functools.partial(jax.jit, static_argnames=("filter_sizes", "compute_dtype"))
def motif_type_cnn_forward(x_idx, embeddings, conv_ws, conv_bs, lin_w, lin_b,
                           filter_sizes, compute_dtype=jnp.bfloat16):
    """x_idx: int32 (B, S) token indices. Returns (B, O) float32 logits
    ((B,) if O == 1, mirroring .squeeze(1))."""
    filter_sizes = tuple(filter_sizes)
    B, S = x_idx.shape
    V, D = embeddings.shape
    F = conv_ws[0].shape[-1]
    O = lin_w.shape[-1]
    n_conv = len(filter_sizes)
    n_taps = sum(filter_sizes)
    C = n_taps * F
    n_feat = n_conv * F
    O_pad = max(128, ((O + 127) // 128) * 128)       # lane-dense output width

    # --- parameter packing (folds into the single dispatch under jit; in a
    #     real deployment pack once outside the step function) ---
    # Algebraic fold: emb @ W_cat == onehot @ (table @ W_cat).
    wcat = jnp.concatenate(
        [conv_ws[i][k].astype(jnp.float32)
         for i, fs in enumerate(filter_sizes) for k in range(fs)],
        axis=-1)                                                     # (D, C)
    table_w = jnp.dot(embeddings.astype(jnp.float32), wcat,
                      precision=jax.lax.Precision.HIGHEST
                      ).astype(compute_dtype)                        # (V, C)
    bias_all = jnp.stack(conv_bs, axis=0).astype(jnp.float32)        # (n_conv, F)
    # Zero-pad the Linear to a lane-dense, 128-wide output.
    lw = jnp.zeros((n_feat, O_pad), jnp.float32).at[:, :O].set(
        lin_w.astype(jnp.float32))
    lb = jnp.zeros((1, O_pad), jnp.float32).at[:, :O].set(
        lin_b.astype(jnp.float32).reshape(1, O))
    idx = x_idx.astype(jnp.int32)                                    # (B, S)

    operand_bytes = jnp.dtype(compute_dtype).itemsize
    n_cores = _num_tensorcores()
    Bt = _pick_block_batch(B, S, V, C, n_feat, O_pad, operand_bytes, n_cores)
    nb = B // Bt
    kernel = _make_kernel(filter_sizes, Bt, S, V, F)

    # Explicit scoped-VMEM sizing (leave headroom under v7x's 64 MiB physical).
    vmem_limit = int(min(
        48 << 20,
        max(32 << 20,
            2 * _block_bytes(Bt, S, V, C, n_feat, O_pad, operand_bytes)
            + 4 * V * C * operand_bytes + (1 << 20))))

    def full(shape):
        return pl.BlockSpec(shape, lambda i, _n=len(shape): (0,) * _n)

    # NOTE(review #9): the parameter inputs below are grid-invariant; for a
    # large V the table_w spec should get pipeline_mode=pl.Buffered(1) (or a
    # one-time manual DMA) so it is not double-buffered in VMEM.
    out = pl.pallas_call(
        kernel,
        out_shape=jax.ShapeDtypeStruct((B, O_pad), jnp.float32),
        grid=(nb,),
        in_specs=[
            pl.BlockSpec((Bt, S), lambda i: (i, 0)),   # token ids (lane-dense)
            full((V, C)),                              # folded table @ conv weights
            full((n_conv, F)),                         # conv biases
            full((n_feat, O_pad)),                     # padded Linear weight
            full((1, O_pad)),                          # padded Linear bias
        ],
        out_specs=pl.BlockSpec((Bt, O_pad), lambda i: (i, 0)),
        compiler_params=pltpu.CompilerParams(
            dimension_semantics=("parallel",),
            vmem_limit_bytes=vmem_limit),
    )(idx, table_w, bias_all, lw, lb)

    out = out[:, :O]
    return out if O != 1 else out[:, 0]


def _reference_forward(x_idx, embeddings, conv_ws, conv_bs, lin_w, lin_b,
                       filter_sizes):
    emb = jnp.take(embeddings, x_idx, axis=0).astype(jnp.float32)
    B, S, D = emb.shape
    pooled = []
    for fs, w, b in zip(filter_sizes, conv_ws, conv_bs):
        L = S - fs + 1
        acc = jnp.zeros((B, L, w.shape[-1]), jnp.float32)
        for k in range(fs):
            acc = acc + jnp.einsum("bld,df->blf", emb[:, k:k + L, :], w[k],
                                   precision=jax.lax.Precision.HIGHEST)
        acc = jax.nn.relu(acc + b[None, None, :])
        pooled.append(acc.max(axis=1))
    cat = jnp.concatenate(pooled, axis=-1)
    out = cat @ lin_w + lin_b[None, :]
    return out if lin_w.shape[-1] != 1 else out[:, 0]


if __name__ == "__main__":
    # Small, module-consistent shapes.  batch=16 still allows a 2-block grid
    # on 2-TensorCore chips while fitting one block on v5e/v6e.
    vocab_size = 20       # rows of the pretrained embedding table
    vector_size = 16      # embedding dim (conv kernel width)
    seq_len = 8           # tokens per example
    batch = 16
    n_filters = 8
    filter_sizes = (2, 3, 4)
    output_dim = 3

    key = jax.random.PRNGKey(0)
    k_emb, k_x, k_lw, k_lb, *k_conv = jax.random.split(
        key, 4 + 2 * len(filter_sizes))

    embeddings = jax.random.normal(k_emb, (vocab_size, vector_size), jnp.float32)
    x_idx = jax.random.randint(k_x, (batch, seq_len), 0, vocab_size, jnp.int32)

    conv_ws, conv_bs = [], []
    for i, fs in enumerate(filter_sizes):
        kw, kb = k_conv[2 * i], k_conv[2 * i + 1]
        # Conv2d weight (n_filters, 1, fs, vector_size) stored as (fs, D, F).
        conv_ws.append(
            0.1 * jax.random.normal(kw, (fs, vector_size, n_filters), jnp.float32))
        conv_bs.append(
            0.1 * jax.random.normal(kb, (n_filters,), jnp.float32))

    lin_w = 0.1 * jax.random.normal(
        k_lw, (len(filter_sizes) * n_filters, output_dim), jnp.float32)
    lin_b = 0.1 * jax.random.normal(k_lb, (output_dim,), jnp.float32)

    # Fast path: bf16 MXU operands, f32 accumulation + f32 elementwise.
    out_fast = motif_type_cnn_forward(
        x_idx, embeddings, conv_ws, conv_bs, lin_w, lin_b,
        filter_sizes=filter_sizes)
    out_fast = jax.block_until_ready(out_fast)

    # Structural-correctness path: same kernel, f32 operands.
    out_f32 = motif_type_cnn_forward(
        x_idx, embeddings, conv_ws, conv_bs, lin_w, lin_b,
        filter_sizes=filter_sizes, compute_dtype=jnp.float32)
    out_f32 = jax.block_until_ready(out_f32)

    ref = jax.block_until_ready(_reference_forward(
        x_idx, embeddings, conv_ws, conv_bs, lin_w, lin_b, filter_sizes))

    assert out_fast.shape == (batch, output_dim), out_fast.shape
    assert out_f32.shape == (batch, output_dim), out_f32.shape
    assert jnp.allclose(out_f32, ref, atol=1e-4, rtol=1e-4), (out_f32, ref)
    # bf16 rounding of the folded table -> looser tolerance on the fast path.
    assert jnp.allclose(out_fast, ref, atol=5e-2, rtol=5e-2), (out_fast, ref)
    print("KERNEL_OK")
</pallas_src>

<mosaic_0001>
module attributes {stable_mosaic.version = 11 : i64} {
  func.func @kernel(%arg0: i32, %arg1: memref<16x8xi32, #tpu.memory_space<vmem>>, %arg2: memref<20x72xbf16, #tpu.memory_space<vmem>>, %arg3: memref<3x8xf32, #tpu.memory_space<vmem>>, %arg4: memref<24x128xf32, #tpu.memory_space<vmem>>, %arg5: memref<1x128xf32, #tpu.memory_space<vmem>>, %arg6: memref<16x128xf32, #tpu.memory_space<vmem>>) attributes {dimension_semantics = [#tpu.dimension_semantics<parallel>], iteration_bounds = array<i64: 1>, scalar_prefetch = 0 : i64, scratch_operands = 0 : i64, tpu.core_type = #tpu.core_type<tc>, window_params = [{transform_indices = @transform_0, window_bounds = array<i64: 16, 8>}, {pipeline_mode = #tpu.pipeline_mode<synchronous>, transform_indices = @transform_1, window_bounds = array<i64: 20, 72>}, {pipeline_mode = #tpu.pipeline_mode<synchronous>, transform_indices = @transform_2, window_bounds = array<i64: 3, 8>}, {pipeline_mode = #tpu.pipeline_mode<synchronous>, transform_indices = @transform_3, window_bounds = array<i64: 24, 128>}, {pipeline_mode = #tpu.pipeline_mode<synchronous>, transform_indices = @transform_4, window_bounds = array<i64: 1, 128>}, {transform_indices = @transform_5, window_bounds = array<i64: 16, 128>}]} {
    %c0 = arith.constant 0 : index
    %c0_0 = arith.constant 0 : index
    %0 = vector.load %arg1[%c0, %c0_0] : memref<16x8xi32, #tpu.memory_space<vmem>>, vector<16x8xi32>
    %1 = tpu.iota {dimensions = array<i32: 2>} : vector<16x8x20xi32>
    %2 = vector.shape_cast %0 : vector<16x8xi32> to vector<16x8x1xi32>
    %3 = vector.broadcast %2 : vector<16x8x1xi32> to vector<16x8x20xi32>
    %4 = arith.cmpi eq, %1, %3 : vector<16x8x20xi32>
    %5 = arith.extui %4 : vector<16x8x20xi1> to vector<16x8x20xi32>
    %6 = arith.sitofp %5 : vector<16x8x20xi32> to vector<16x8x20xf32>
    %7 = vector.shape_cast %6 : vector<16x8x20xf32> to vector<128x20xf32>
    %8 = arith.truncf %7 : vector<128x20xf32> to vector<128x20xbf16>
    %c0_1 = arith.constant 0 : index
    %c0_2 = arith.constant 0 : index
    %9 = vector.load %arg2[%c0_1, %c0_2] : memref<20x72xbf16, #tpu.memory_space<vmem>>, vector<20x72xbf16>
    %cst = arith.constant dense<0.000000e+00> : vector<128x72xf32>
    %10 = tpu.matmul %8, %9, %cst {dimension_numbers = #tpu.dot_dimension_numbers<[1], [0], [0], [1], [0, 0, 1, 1], [], []>} : vector<128x20xbf16>, vector<20x72xbf16>, vector<128x72xf32> -> vector<128x72xf32>
    %11 = vector.shape_cast %10 : vector<128x72xf32> to vector<16x8x72xf32>
    %12 = vector.extract_strided_slice %11 {offsets = [0, 0, 0], sizes = [16, 7, 8], strides = [1, 1, 1]} : vector<16x8x72xf32> to vector<16x7x8xf32>
    %13 = vector.extract_strided_slice %11 {offsets = [0, 1, 8], sizes = [16, 7, 8], strides = [1, 1, 1]} : vector<16x8x72xf32> to vector<16x7x8xf32>
    %14 = arith.addf %12, %13 : vector<16x7x8xf32>
    %cst_3 = arith.constant dense<0xFF800000> : vector<16x8xf32>
    %15 = vector.multi_reduction <maximumf>, %14, %cst_3 [1] : vector<16x7x8xf32> to vector<16x8xf32>
    %c0_4 = arith.constant 0 : index
    %c0_5 = arith.constant 0 : index
    %16 = vector.load %arg3[%c0_4, %c0_5] : memref<3x8xf32, #tpu.memory_space<vmem>>, vector<1x8xf32>
    %17 = vector.broadcast %16 : vector<1x8xf32> to vector<16x8xf32>
    %18 = arith.addf %15, %17 : vector<16x8xf32>
    %cst_6 = arith.constant 0.000000e+00 : f32
    %19 = vector.broadcast %cst_6 : f32 to vector<16x8xf32>
    %20 = arith.maximumf %18, %19 : vector<16x8xf32>
    %21 = vector.extract_strided_slice %11 {offsets = [0, 0, 16], sizes = [16, 6, 8], strides = [1, 1, 1]} : vector<16x8x72xf32> to vector<16x6x8xf32>
    %22 = vector.extract_strided_slice %11 {offsets = [0, 1, 24], sizes = [16, 6, 8], strides = [1, 1, 1]} : vector<16x8x72xf32> to vector<16x6x8xf32>
    %23 = arith.addf %21, %22 : vector<16x6x8xf32>
    %24 = vector.extract_strided_slice %11 {offsets = [0, 2, 32], sizes = [16, 6, 8], strides = [1, 1, 1]} : vector<16x8x72xf32> to vector<16x6x8xf32>
    %25 = arith.addf %23, %24 : vector<16x6x8xf32>
    %cst_7 = arith.constant dense<0xFF800000> : vector<16x8xf32>
    %26 = vector.multi_reduction <maximumf>, %25, %cst_7 [1] : vector<16x6x8xf32> to vector<16x8xf32>
    %c1 = arith.constant 1 : index
    %c0_8 = arith.constant 0 : index
    %27 = vector.load %arg3[%c1, %c0_8] : memref<3x8xf32, #tpu.memory_space<vmem>>, vector<1x8xf32>
    %28 = vector.broadcast %27 : vector<1x8xf32> to vector<16x8xf32>
    %29 = arith.addf %26, %28 : vector<16x8xf32>
    %cst_9 = arith.constant 0.000000e+00 : f32
    %30 = vector.broadcast %cst_9 : f32 to vector<16x8xf32>
    %31 = arith.maximumf %29, %30 : vector<16x8xf32>
    %32 = vector.extract_strided_slice %11 {offsets = [0, 0, 40], sizes = [16, 5, 8], strides = [1, 1, 1]} : vector<16x8x72xf32> to vector<16x5x8xf32>
    %33 = vector.extract_strided_slice %11 {offsets = [0, 1, 48], sizes = [16, 5, 8], strides = [1, 1, 1]} : vector<16x8x72xf32> to vector<16x5x8xf32>
    %34 = arith.addf %32, %33 : vector<16x5x8xf32>
    %35 = vector.extract_strided_slice %11 {offsets = [0, 2, 56], sizes = [16, 5, 8], strides = [1, 1, 1]} : vector<16x8x72xf32> to vector<16x5x8xf32>
    %36 = arith.addf %34, %35 : vector<16x5x8xf32>
    %37 = vector.extract_strided_slice %11 {offsets = [0, 3, 64], sizes = [16, 5, 8], strides = [1, 1, 1]} : vector<16x8x72xf32> to vector<16x5x8xf32>
    %38 = arith.addf %36, %37 : vector<16x5x8xf32>
    %cst_10 = arith.constant dense<0xFF800000> : vector<16x8xf32>
    %39 = vector.multi_reduction <maximumf>, %38, %cst_10 [1] : vector<16x5x8xf32> to vector<16x8xf32>
    %c2 = arith.constant 2 : index
    %c0_11 = arith.constant 0 : index
    %40 = vector.load %arg3[%c2, %c0_11] : memref<3x8xf32, #tpu.memory_space<vmem>>, vector<1x8xf32>
    %41 = vector.broadcast %40 : vector<1x8xf32> to vector<16x8xf32>
    %42 = arith.addf %39, %41 : vector<16x8xf32>
    %cst_12 = arith.constant 0.000000e+00 : f32
    %43 = vector.broadcast %cst_12 : f32 to vector<16x8xf32>
    %44 = arith.maximumf %42, %43 : vector<16x8xf32>
    %45 = tpu.concatenate %20, %31, %44 in 1 : vector<16x8xf32>, vector<16x8xf32>, vector<16x8xf32> -> vector<16x24xf32>
    %c0_13 = arith.constant 0 : index
    %c0_14 = arith.constant 0 : index
    %46 = vector.load %arg4[%c0_13, %c0_14] : memref<24x128xf32, #tpu.memory_space<vmem>>, vector<24x128xf32>
    %cst_15 = arith.constant dense<0.000000e+00> : vector<16x128xf32>
    %47 = tpu.matmul %45, %46, %cst_15 {dimension_numbers = #tpu.dot_dimension_numbers<[1], [0], [0], [1], [0, 0, 1, 1], [], []>} : vector<16x24xf32>, vector<24x128xf32>, vector<16x128xf32> -> vector<16x128xf32>
    %c0_16 = arith.constant 0 : index
    %c0_17 = arith.constant 0 : index
    %48 = vector.load %arg5[%c0_16, %c0_17] : memref<1x128xf32, #tpu.memory_space<vmem>>, vector<1x128xf32>
    %49 = vector.broadcast %48 : vector<1x128xf32> to vector<16x128xf32>
    %50 = arith.addf %47, %49 : vector<16x128xf32>
    %c0_18 = arith.constant 0 : index
    %c0_19 = arith.constant 0 : index
    %51 = vector.load %arg6[%c0_18, %c0_19] : memref<16x128xf32, #tpu.memory_space<vmem>>, vector<16x128xf32>
    tpu.vector_store %arg6[%c0_18, %c0_19], %50 {strides = array<i32>} : memref<16x128xf32, #tpu.memory_space<vmem>>, vector<16x128xf32>,
    return
  }
  func.func @transform_0(%arg0: i32) -> (i32, i32) {
    %c0_i32 = arith.constant 0 : i32
    %c0_i32_0 = arith.constant 0 : i32
    return %arg0, %c0_i32 : i32, i32
  }
  func.func @transform_1(%arg0: i32) -> (i32, i32) {
    %c0_i32 = arith.constant 0 : i32
    %c0_i32_0 = arith.constant 0 : i32
    %c0_i32_1 = arith.constant 0 : i32
    return %c0_i32, %c0_i32_0 : i32, i32
  }
  func.func @transform_2(%arg0: i32) -> (i32, i32) {
    %c0_i32 = arith.constant 0 : i32
    %c0_i32_0 = arith.constant 0 : i32
    %c0_i32_1 = arith.constant 0 : i32
    return %c0_i32, %c0_i32_0 : i32, i32
  }
  func.func @transform_3(%arg0: i32) -> (i32, i32) {
    %c0_i32 = arith.constant 0 : i32
    %c0_i32_0 = arith.constant 0 : i32
    %c0_i32_1 = arith.constant 0 : i32
    return %c0_i32, %c0_i32_0 : i32, i32
  }
  func.func @transform_4(%arg0: i32) -> (i32, i32) {
    %c0_i32 = arith.constant 0 : i32
    %c0_i32_0 = arith.constant 0 : i32
    %c0_i32_1 = arith.constant 0 : i32
    return %c0_i32, %c0_i32_0 : i32, i32
  }
  func.func @transform_5(%arg0: i32) -> (i32, i32) {
    %c0_i32 = arith.constant 0 : i32
    %c0_i32_0 = arith.constant 0 : i32
    return %arg0, %c0_i32 : i32, i32
  }
}

</mosaic_0001>

<llo_original>
// kernel: motif_type_cnn_forward.1
$region0: #{motif_type_cnn_forward.1}
  #allocation0 [shape = 'u32[]', space=smem, size = 0x4, offset = 0x4, fixed_abs, tag = 'smem constant byte address 0x4 - core index']
  #allocation1 [shape = 'u32[144,128]{1,0:T(1,128)}', space=vmem, size = 0x12000, scoped, tag = 'internal scratch']
  %s0 = inlined_call_operand.vmem [shape: s32[16,8], index: 0, kind: input, shape index: {}]
  %s1 = inlined_call_operand.vmem [shape: bf16[20,72], index: 1, kind: input, shape index: {}]
  %s2 = inlined_call_operand.vmem [shape: f32[3,8], index: 2, kind: input, shape index: {}]
  %s3 = inlined_call_operand.vmem [shape: f32[24,128], index: 3, kind: input, shape index: {}]
  %s4 = inlined_call_operand.vmem [shape: f32[1,128], index: 4, kind: input, shape index: {}]
  %s5 = inlined_call_operand.vmem [shape: f32[16,128], index: 5, kind: output, shape index: {}]
  %s6 = sld [smem:[#allocation0]]
  $region30: #{motif_type_cnn_forward.1} parent=0
    _
  %s8 = ssub.s32 1, %s6
  %s9 = scalar_select 0, %s8, %s6
  // Predicated region
  $region2: #{motif_type_cnn_forward.1} parent=0 // pred_check
    _
  $region3: #{motif_type_cnn_forward.1} parent=0 // pred_check_branch
    %11 = sbr.rel (0) target = $region5
  $region4: #{motif_type_cnn_forward.1} parent=0 // pred_region
    _
  $region5: #{motif_type_cnn_forward.1} parent=0 // pred_fallthru
    _
  // Predicated region
  $region6: #{motif_type_cnn_forward.1} parent=0 // pred_check
    _
  $region7: #{motif_type_cnn_forward.1} parent=0 // pred_check_branch
    %13 = sbr.rel (0) target = $region9
  $region8: #{motif_type_cnn_forward.1} parent=0 // pred_region
    _
  $region9: #{motif_type_cnn_forward.1} parent=0 // pred_fallthru
    _
  // Predicated region
  $region10: #{motif_type_cnn_forward.1} parent=0 // pred_check
    _
  $region11: #{motif_type_cnn_forward.1} parent=0 // pred_check_branch
    %15 = sbr.rel (0) target = $region13
  $region12: #{motif_type_cnn_forward.1} parent=0 // pred_region
    _
  $region13: #{motif_type_cnn_forward.1} parent=0 // pred_fallthru
    _
  // Predicated region
  $region14: #{motif_type_cnn_forward.1} parent=0 // pred_check
    _
  $region15: #{motif_type_cnn_forward.1} parent=0 // pred_check_branch
    %17 = sbr.rel (0) target = $region17
  $region16: #{motif_type_cnn_forward.1} parent=0 // pred_region
    _
  $region17: #{motif_type_cnn_forward.1} parent=0 // pred_fallthru
    _
  // Predicated region
  $region18: #{motif_type_cnn_forward.1} parent=0 // pred_check
    _
  $region19: #{motif_type_cnn_forward.1} parent=0 // pred_check_branch
    %19 = sbr.rel (0) target = $region21
  $region20: #{motif_type_cnn_forward.1} parent=0 // pred_region
    _
  $region21: #{motif_type_cnn_forward.1} parent=0 // pred_fallthru
    _
  %v21 = vld [vmem:[%s0] sm:$0xff]
  %v22 = vld [vmem:[%s0 + $0x8] sm:$0xff]
  %v23 = vlaneseq
  %v24 = vand.u32 %v23, 127
  %v25 = vlaneseq
  %v26 = vshrl.u32 %v25, 7
  %v27 = vsub.s32 0, %v26
  %v28 = vrot.slane %v21, %v27
  %30 = vbcast.lane.b32.xlu0 %v28, 256
  %v31 = vpop.permute.xlu0 %30
  %v32 = vlaneseq
  %v33 = vshrl.u32 %v32, 7
  %v34 = vsub.s32 1, %v33
  %v35 = vrot.slane %v21, %v34
  %37 = vbcast.lane.b32.xlu0 %v35, 256
  %v38 = vpop.permute.xlu0 %37
  %v39 = vlaneseq
  %v40 = vshrl.u32 %v39, 7
  %v41 = vsub.s32 2, %v40
  %v42 = vrot.slane %v21, %v41
  %44 = vbcast.lane.b32.xlu0 %v42, 256
  %v45 = vpop.permute.xlu0 %44
  %v46 = vlaneseq
  %v47 = vshrl.u32 %v46, 7
  %v48 = vsub.s32 3, %v47
  %v49 = vrot.slane %v21, %v48
  %51 = vbcast.lane.b32.xlu0 %v49, 256
  %v52 = vpop.permute.xlu0 %51
  %v53 = vlaneseq
  %v54 = vshrl.u32 %v53, 7
  %v55 = vsub.s32 4, %v54
  %v56 = vrot.slane %v21, %v55
  %58 = vbcast.lane.b32.xlu0 %v56, 256
  %v59 = vpop.permute.xlu0 %58
  %v60 = vlaneseq
  %v61 = vshrl.u32 %v60, 7
  %v62 = vsub.s32 5, %v61
  %v63 = vrot.slane %v21, %v62
  %65 = vbcast.lane.b32.xlu0 %v63, 256
  %v66 = vpop.permute.xlu0 %65
  %v67 = vlaneseq
  %v68 = vshrl.u32 %v67, 7
  %v69 = vsub.s32 6, %v68
  %v70 = vrot.slane %v21, %v69
  %72 = vbcast.lane.b32.xlu0 %v70, 256
  %v73 = vpop.permute.xlu0 %72
  %v74 = vlaneseq
  %v75 = vshrl.u32 %v74, 7
  %v76 = vsub.s32 7, %v75
  %v77 = vrot.slane %v21, %v76
  %79 = vbcast.lane.b32.xlu0 %v77, 256
  %v80 = vpop.permute.xlu0 %79
  %v81 = vlaneseq
  %v82 = vshrl.u32 %v81, 7
  %v83 = vsub.s32 0, %v82
  %v84 = vrot.slane %v22, %v83
  %86 = vbcast.lane.b32.xlu0 %v84, 256
  %v87 = vpop.permute.xlu0 %86
  %v88 = vlaneseq
  %v89 = vshrl.u32 %v88, 7
  %v90 = vsub.s32 1, %v89
  %v91 = vrot.slane %v22, %v90
  %93 = vbcast.lane.b32.xlu0 %v91, 256
  %v94 = vpop.permute.xlu0 %93
  %v95 = vlaneseq
  %v96 = vshrl.u32 %v95, 7
  %v97 = vsub.s32 2, %v96
  %v98 = vrot.slane %v22, %v97
  %100 = vbcast.lane.b32.xlu0 %v98, 256
  %v101 = vpop.permute.xlu0 %100
  %v102 = vlaneseq
  %v103 = vshrl.u32 %v102, 7
  %v104 = vsub.s32 3, %v103
  %v105 = vrot.slane %v22, %v104
  %107 = vbcast.lane.b32.xlu0 %v105, 256
  %v108 = vpop.permute.xlu0 %107
  %v109 = vlaneseq
  %v110 = vshrl.u32 %v109, 7
  %v111 = vsub.s32 4, %v110
  %v112 = vrot.slane %v22, %v111
  %114 = vbcast.lane.b32.xlu0 %v112, 256
  %v115 = vpop.permute.xlu0 %114
  %v116 = vlaneseq
  %v117 = vshrl.u32 %v116, 7
  %v118 = vsub.s32 5, %v117
  %v119 = vrot.slane %v22, %v118
  %121 = vbcast.lane.b32.xlu0 %v119, 256
  %v122 = vpop.permute.xlu0 %121
  %v123 = vlaneseq
  %v124 = vshrl.u32 %v123, 7
  %v125 = vsub.s32 6, %v124
  %v126 = vrot.slane %v22, %v125
  %128 = vbcast.lane.b32.xlu0 %v126, 256
  %v129 = vpop.permute.xlu0 %128
  %v130 = vlaneseq
  %v131 = vshrl.u32 %v130, 7
  %v132 = vsub.s32 7, %v131
  %v133 = vrot.slane %v22, %v132
  %135 = vbcast.lane.b32.xlu0 %v133, 256
  %v136 = vpop.permute.xlu0 %135
  %vm137 = vcmp.eq.s32.totalorder %v24, %v31
  %vm138 = vcmp.eq.s32.totalorder %v24, %v38
  %vm139 = vcmp.eq.s32.totalorder %v24, %v45
  %vm140 = vcmp.eq.s32.totalorder %v24, %v52
  %vm141 = vcmp.eq.s32.totalorder %v24, %v59
  %vm142 = vcmp.eq.s32.totalorder %v24, %v66
  %vm143 = vcmp.eq.s32.totalorder %v24, %v73
  %vm144 = vcmp.eq.s32.totalorder %v24, %v80
  %vm145 = vcmp.eq.s32.totalorder %v24, %v87
  %vm146 = vcmp.eq.s32.totalorder %v24, %v94
  %vm147 = vcmp.eq.s32.totalorder %v24, %v101
  %vm148 = vcmp.eq.s32.totalorder %v24, %v108
  %vm149 = vcmp.eq.s32.totalorder %v24, %v115
  %vm150 = vcmp.eq.s32.totalorder %v24, %v122
  %vm151 = vcmp.eq.s32.totalorder %v24, %v129
  %vm152 = vcmp.eq.s32.totalorder %v24, %v136
  %v153 = vsel %vm137, 1, 0
  %v154 = vsel %vm138, 1, 0
  %v155 = vsel %vm139, 1, 0
  %v156 = vsel %vm140, 1, 0
  %v157 = vsel %vm141, 1, 0
  %v158 = vsel %vm142, 1, 0
  %v159 = vsel %vm143, 1, 0
  %v160 = vsel %vm144, 1, 0
  %v161 = vsel %vm145, 1, 0
  %v162 = vsel %vm146, 1, 0
  %v163 = vsel %vm147, 1, 0
  %v164 = vsel %vm148, 1, 0
  %v165 = vsel %vm149, 1, 0
  %v166 = vsel %vm150, 1, 0
  %v167 = vsel %vm151, 1, 0
  %v168 = vsel %vm152, 1, 0
  %v169 = vcvt.s32.f32 %v153
  %v170 = vcvt.s32.f32 %v154
  %v171 = vcvt.s32.f32 %v155
  %v172 = vcvt.s32.f32 %v156
  %v173 = vcvt.s32.f32 %v157
  %v174 = vcvt.s32.f32 %v158
  %v175 = vcvt.s32.f32 %v159
  %v176 = vcvt.s32.f32 %v160
  %v177 = vcvt.s32.f32 %v161
  %v178 = vcvt.s32.f32 %v162
  %v179 = vcvt.s32.f32 %v163
  %v180 = vcvt.s32.f32 %v164
  %v181 = vcvt.s32.f32 %v165
  %v182 = vcvt.s32.f32 %v166
  %v183 = vcvt.s32.f32 %v167
  %v184 = vcvt.s32.f32 %v168
  %v185 = vpack.c.bf16 %v170, %v169
  %v186 = vpack.c.bf16 %v172, %v171
  %v187 = vpack.c.bf16 %v174, %v173
  %v188 = vpack.c.bf16 %v176, %v175
  %v189 = vpack.c.bf16 %v178, %v177
  %v190 = vpack.c.bf16 %v180, %v179
  %v191 = vpack.c.bf16 %v182, %v181
  %v192 = vpack.c.bf16 %v184, %v183
  %v193 = vld [vmem:[%s1] sm:$0xf]
  %v194 = vld [vmem:[%s1 + $0x4] sm:$0xf]
  %v195 = vld [vmem:[%s1 + $0x8] sm:$0x3]
  %v199 = vunpack.c.l.b16 %v193
  %v200 = vunpack.c.l.b16 %v194
  %v201 = vunpack.c.l.b16 %v195
  %v202 = vpack.c.b16 %v200, %v199
  %v203 = vpack.c.b16 %v201, %v201
  %vm205 = vcmask 162816
  %v207 = vsel %vm205, %v185, 0
  %v210 = vsel %vm205, %v186, 0
  %v213 = vsel %vm205, %v187, 0
  %v216 = vsel %vm205, %v188, 0
  %v219 = vsel %vm205, %v189, 0
  %v222 = vsel %vm205, %v190, 0
  %v225 = vsel %vm205, %v191, 0
  %v228 = vsel %vm205, %v192, 0
  %vm230 = vcmask 1041408
  %v232 = vsel %vm230, %v203, 0
  %234 = vmatprep.subr.bf16.mxu0 0
  %235 = vmatpush1.bf16.msra.mxu0 0
  %236 = vmatprep.subr.bf16.mxu0 0
  %237 = vmatpush1.bf16.msra.mxu0 0
  %238 = vmatprep.subr.bf16.mxu0 0
  %239 = vmatpush1.bf16.msra.mxu0 0
  %240 = vmatprep.subr.bf16.mxu0 0
  %241 = vmatpush1.bf16.msra.mxu0 0
  %242 = vmatprep.subr.bf16.mxu0 0
  %243 = vmatpush1.bf16.msra.mxu0 0
  %244 = vmatprep.subr.bf16.mxu0 0
  %245 = vmatpush1.bf16.msra.mxu0 0
  %246 = vmatprep.subr.bf16.mxu0 0
  %247 = vmatpush1.bf16.msra.mxu0 %v232
  %248 = vmatprep.subr.bf16.mxu0 0
  %249 = vmatpush1.bf16.msra.mxu0 %v202
  %250 = vmatprep.subr.bf16.mxu0 0
  %251 = vmatpush2.bf16.msra.mxu0 0
  %252 = vmatprep.subr.bf16.mxu0 0
  %253 = vmatpush2.bf16.msra.mxu0 0
  %254 = vmatprep.subr.bf16.mxu0 0
  %255 = vmatpush2.bf16.msra.mxu0 0
  %256 = vmatprep.subr.bf16.mxu0 0
  %257 = vmatpush2.bf16.msra.mxu0 0
  %258 = vmatprep.subr.bf16.mxu0 0
  %259 = vmatpush2.bf16.msra.mxu0 0
  %260 = vmatprep.subr.bf16.mxu0 0
  %261 = vmatpush2.bf16.msra.mxu0 0
  %262 = vmatprep.subr.bf16.mxu0 0
  %263 = vmatpush2.bf16.msra.mxu0 0
  %264 = vmatprep.subr.bf16.mxu0 0
  %265 = vmatpush2.bf16.msra.mxu0 0
  %266 = vmatprep.mubr.bf16.mxu0 0
  %267 = vmatmul.mubr.bf16.gmra.mxu0 %v207
  %v268 = vpop.f32.mrf.mxu0
  %v269 = vadd.f32 0.0, %v268
  %v270 = vpop.f32.mrf.mxu0
  %v271 = vpop.f32.mrf.mxu0
  %v272 = vadd.f32 0.0, %v271
  %v273 = vpop.f32.mrf.mxu0
  %274 = vmatprep.mubr.bf16.mxu0 0
  %275 = vmatmul.mubr.bf16.gmra.mxu0 %v210
  %v276 = vpop.f32.mrf.mxu0
  %v277 = vadd.f32 0.0, %v276
  %v278 = vpop.f32.mrf.mxu0
  %v279 = vpop.f32.mrf.mxu0
  %v280 = vadd.f32 0.0, %v279
  %v281 = vpop.f32.mrf.mxu0
  %282 = vmatprep.mubr.bf16.mxu0 0
  %283 = vmatmul.mubr.bf16.gmra.mxu0 %v213
  %v284 = vpop.f32.mrf.mxu0
  %v285 = vadd.f32 0.0, %v284
  %v286 = vpop.f32.mrf.mxu0
  %v287 = vpop.f32.mrf.mxu0
  %v288 = vadd.f32 0.0, %v287
  %v289 = vpop.f32.mrf.mxu0
  %290 = vmatprep.mubr.bf16.mxu0 0
  %291 = vmatmul.mubr.bf16.gmra.mxu0 %v216
  %v292 = vpop.f32.mrf.mxu0
  %v293 = vadd.f32 0.0, %v292
  %v294 = vpop.f32.mrf.mxu0
  %v295 = vpop.f32.mrf.mxu0
  %v296 = vadd.f32 0.0, %v295
  %v297 = vpop.f32.mrf.mxu0
  %298 = vmatprep.mubr.bf16.mxu0 0
  %299 = vmatmul.mubr.bf16.gmra.mxu0 %v219
  %v300 = vpop.f32.mrf.mxu0
  %v301 = vadd.f32 0.0, %v300
  %v302 = vpop.f32.mrf.mxu0
  %v303 = vpop.f32.mrf.mxu0
  %v304 = vadd.f32 0.0, %v303
  %v305 = vpop.f32.mrf.mxu0
  %306 = vmatprep.mubr.bf16.mxu0 0
  %307 = vmatmul.mubr.bf16.gmra.mxu0 %v222
  %v308 = vpop.f32.mrf.mxu0
  %v309 = vadd.f32 0.0, %v308
  %v310 = vpop.f32.mrf.mxu0
  %v311 = vpop.f32.mrf.mxu0
  %v312 = vadd.f32 0.0, %v311
  %v313 = vpop.f32.mrf.mxu0
  %314 = vmatprep.mubr.bf16.mxu0 0
  %315 = vmatmul.mubr.bf16.gmra.mxu0 %v225
  %v316 = vpop.f32.mrf.mxu0
  %v317 = vadd.f32 0.0, %v316
  %v318 = vpop.f32.mrf.mxu0
  %v319 = vpop.f32.mrf.mxu0
  %v320 = vadd.f32 0.0, %v319
  %v321 = vpop.f32.mrf.mxu0
  %322 = vmatprep.mubr.bf16.mxu0 0
  %323 = vmatmul.mubr.bf16.gmra.mxu0 %v228
  %v324 = vpop.f32.mrf.mxu0
  %v325 = vadd.f32 0.0, %v324
  %v326 = vpop.f32.mrf.mxu0
  %v327 = vpop.f32.mrf.mxu0
  %v328 = vadd.f32 0.0, %v327
  %v329 = vpop.f32.mrf.mxu0
  %330 = vdwg.mxu0
  %v347 = vrot.slane %v269, 1
  %v348 = vrot.slane %v272, 1
  %v349 = vrot.slane %v277, 1
  %v350 = vrot.slane %v280, 1
  %v351 = vrot.slane %v285, 1
  %v352 = vrot.slane %v288, 1
  %v353 = vrot.slane %v293, 1
  %v354 = vrot.slane %v296, 1
  %v355 = vrot.slane %v301, 1
  %v356 = vrot.slane %v304, 1
  %v357 = vrot.slane %v309, 1
  %v358 = vrot.slane %v312, 1
  %v359 = vrot.slane %v317, 1
  %v360 = vrot.slane %v320, 1
  %v361 = vrot.slane %v325, 1
  %v362 = vrot.slane %v328, 1
  %363 = vrot.lane.b32.xlu0 %v347, 120
  %v364 = vpop.permute.xlu0 %363
  %365 = vrot.lane.b32.xlu0 %v348, 120
  %v366 = vpop.permute.xlu0 %365
  %367 = vrot.lane.b32.xlu0 %v349, 120
  %v368 = vpop.permute.xlu0 %367
  %369 = vrot.lane.b32.xlu0 %v350, 120
  %v370 = vpop.permute.xlu0 %369
  %371 = vrot.lane.b32.xlu0 %v351, 120
  %v372 = vpop.permute.xlu0 %371
  %373 = vrot.lane.b32.xlu0 %v352, 120
  %v374 = vpop.permute.xlu0 %373
  %375 = vrot.lane.b32.xlu0 %v353, 120
  %v376 = vpop.permute.xlu0 %375
  %377 = vrot.lane.b32.xlu0 %v354, 120
  %v378 = vpop.permute.xlu0 %377
  %379 = vrot.lane.b32.xlu0 %v355, 120
  %v380 = vpop.permute.xlu0 %379
  %381 = vrot.lane.b32.xlu0 %v356, 120
  %v382 = vpop.permute.xlu0 %381
  %383 = vrot.lane.b32.xlu0 %v357, 120
  %v384 = vpop.permute.xlu0 %383
  %385 = vrot.lane.b32.xlu0 %v358, 120
  %v386 = vpop.permute.xlu0 %385
  %387 = vrot.lane.b32.xlu0 %v359, 120
  %v388 = vpop.permute.xlu0 %387
  %389 = vrot.lane.b32.xlu0 %v360, 120
  %v390 = vpop.permute.xlu0 %389
  %391 = vrot.lane.b32.xlu0 %v361, 120
  %v392 = vpop.permute.xlu0 %391
  %393 = vrot.lane.b32.xlu0 %v362, 120
  %v394 = vpop.permute.xlu0 %393
  %v411 = vadd.f32 %v269, %v364
  %v412 = vadd.f32 %v272, %v366
  %v413 = vadd.f32 %v277, %v368
  %v414 = vadd.f32 %v280, %v370
  %v415 = vadd.f32 %v285, %v372
  %v416 = vadd.f32 %v288, %v374
  %v417 = vadd.f32 %v293, %v376
  %v418 = vadd.f32 %v296, %v378
  %v419 = vadd.f32 %v301, %v380
  %v420 = vadd.f32 %v304, %v382
  %v421 = vadd.f32 %v309, %v384
  %v422 = vadd.f32 %v312, %v386
  %v423 = vadd.f32 %v317, %v388
  %v424 = vadd.f32 %v320, %v390
  %v425 = vadd.f32 %v325, %v392
  %v426 = vadd.f32 %v328, %v394
  %vm427 = vcmask 63488
  %v428 = vsel %vm427, %v411, -inf
  %v429 = vrot.slane %v428, 4
  %v430 = vmax.f32 %v428, %v429
  %v431 = vrot.slane %v430, 2
  %v432 = vmax.f32 %v430, %v431
  %v433 = vrot.slane %v432, 1
  %v434 = vmax.f32 %v432, %v433
  %v435 = vsel %vm427, %v412, -inf
  %v436 = vrot.slane %v435, 4
  %v437 = vmax.f32 %v435, %v436
  %v438 = vrot.slane %v437, 2
  %v439 = vmax.f32 %v437, %v438
  %v440 = vrot.slane %v439, 1
  %v441 = vmax.f32 %v439, %v440
  %v442 = vsel %vm427, %v413, -inf
  %v443 = vrot.slane %v442, 4
  %v444 = vmax.f32 %v442, %v443
  %v445 = vrot.slane %v444, 2
  %v446 = vmax.f32 %v444, %v445
  %v447 = vrot.slane %v446, 1
  %v448 = vmax.f32 %v446, %v447
  %v449 = vsel %vm427, %v414, -inf
  %v450 = vrot.slane %v449, 4
  %v451 = vmax.f32 %v449, %v450
  %v452 = vrot.slane %v451, 2
  %v453 = vmax.f32 %v451, %v452
  %v454 = vrot.slane %v453, 1
  %v455 = vmax.f32 %v453, %v454
  %v456 = vsel %vm427, %v415, -inf
  %v457 = vrot.slane %v456, 4
  %v458 = vmax.f32 %v456, %v457
  %v459 = vrot.slane %v458, 2
  %v460 = vmax.f32 %v458, %v459
  %v461 = vrot.slane %v460, 1
  %v462 = vmax.f32 %v460, %v461
  %v463 = vsel %vm427, %v416, -inf
  %v464 = vrot.slane %v463, 4
  %v465 = vmax.f32 %v463, %v464
  %v466 = vrot.slane %v465, 2
  %v467 = vmax.f32 %v465, %v466
  %v468 = vrot.slane %v467, 1
  %v469 = vmax.f32 %v467, %v468
  %v470 = vsel %vm427, %v417, -inf
  %v471 = vrot.slane %v470, 4
  %v472 = vmax.f32 %v470, %v471
  %v473 = vrot.slane %v472, 2
  %v474 = vmax.f32 %v472, %v473
  %v475 = vrot.slane %v474, 1
  %v476 = vmax.f32 %v474, %v475
  %v477 = vsel %vm427, %v418, -inf
  %v478 = vrot.slane %v477, 4
  %v479 = vmax.f32 %v477, %v478
  %v480 = vrot.slane %v479, 2
  %v481 = vmax.f32 %v479, %v480
  %v482 = vrot.slane %v481, 1
  %v483 = vmax.f32 %v481, %v482
  %v484 = vsel %vm427, %v419, -inf
  %v485 = vrot.slane %v484, 4
  %v486 = vmax.f32 %v484, %v485
  %v487 = vrot.slane %v486, 2
  %v488 = vmax.f32 %v486, %v487
  %v489 = vrot.slane %v488, 1
  %v490 = vmax.f32 %v488, %v489
  %v491 = vsel %vm427, %v420, -inf
  %v492 = vrot.slane %v491, 4
  %v493 = vmax.f32 %v491, %v492
  %v494 = vrot.slane %v493, 2
  %v495 = vmax.f32 %v493, %v494
  %v496 = vrot.slane %v495, 1
  %v497 = vmax.f32 %v495, %v496
  %v498 = vsel %vm427, %v421, -inf
  %v499 = vrot.slane %v498, 4
  %v500 = vmax.f32 %v498, %v499
  %v501 = vrot.slane %v500, 2
  %v502 = vmax.f32 %v500, %v501
  %v503 = vrot.slane %v502, 1
  %v504 = vmax.f32 %v502, %v503
  %v505 = vsel %vm427, %v422, -inf
  %v506 = vrot.slane %v505, 4
  %v507 = vmax.f32 %v505, %v506
  %v508 = vrot.slane %v507, 2
  %v509 = vmax.f32 %v507, %v508
  %v510 = vrot.slane %v509, 1
  %v511 = vmax.f32 %v509, %v510
  %v512 = vsel %vm427, %v423, -inf
  %v513 = vrot.slane %v512, 4
  %v514 = vmax.f32 %v512, %v513
  %v515 = vrot.slane %v514, 2
  %v516 = vmax.f32 %v514, %v515
  %v517 = vrot.slane %v516, 1
  %v518 = vmax.f32 %v516, %v517
  %v519 = vsel %vm427, %v424, -inf
  %v520 = vrot.slane %v519, 4
  %v521 = vmax.f32 %v519, %v520
  %v522 = vrot.slane %v521, 2
  %v523 = vmax.f32 %v521, %v522
  %v524 = vrot.slane %v523, 1
  %v525 = vmax.f32 %v523, %v524
  %v526 = vsel %vm427, %v425, -inf
  %v527 = vrot.slane %v526, 4
  %v528 = vmax.f32 %v526, %v527
  %v529 = vrot.slane %v528, 2
  %v530 = vmax.f32 %v528, %v529
  %v531 = vrot.slane %v530, 1
  %v532 = vmax.f32 %v530, %v531
  %v533 = vsel %vm427, %v426, -inf
  %v534 = vrot.slane %v533, 4
  %v535 = vmax.f32 %v533, %v534
  %v536 = vrot.slane %v535, 2
  %v537 = vmax.f32 %v535, %v536
  %v538 = vrot.slane %v537, 1
  %v539 = vmax.f32 %v537, %v538
  %v540 = vld [vmem:[%s2] sm:$0x1]
  %v541 = vlaneseq
  %v542 = vshrl.u32 %v541, 7
  %v543 = vsub.s32 0, %v542
  %v544 = vrot.slane %v540, %v543
  %v545 = vadd.f32 %v434, %v544
  %v546 = vadd.f32 %v441, %v544
  %v547 = vadd.f32 %v448, %v544
  %v548 = vadd.f32 %v455, %v544
  %v549 = vadd.f32 %v462, %v544
  %v550 = vadd.f32 %v469, %v544
  %v551 = vadd.f32 %v476, %v544
  %v552 = vadd.f32 %v483, %v544
  %v553 = vadd.f32 %v490, %v544
  %v554 = vadd.f32 %v497, %v544
  %v555 = vadd.f32 %v504, %v544
  %v556 = vadd.f32 %v511, %v544
  %v557 = vadd.f32 %v518, %v544
  %v558 = vadd.f32 %v525, %v544
  %v559 = vadd.f32 %v532, %v544
  %v560 = vadd.f32 %v539, %v544
  %v561 = vmax.f32 %v545, 0.0
  %v562 = vmax.f32 %v546, 0.0
  %v563 = vmax.f32 %v547, 0.0
  %v564 = vmax.f32 %v548, 0.0
  %v565 = vmax.f32 %v549, 0.0
  %v566 = vmax.f32 %v550, 0.0
  %v567 = vmax.f32 %v551, 0.0
  %v568 = vmax.f32 %v552, 0.0
  %v569 = vmax.f32 %v553, 0.0
  %v570 = vmax.f32 %v554, 0.0
  %v571 = vmax.f32 %v555, 0.0
  %v572 = vmax.f32 %v556, 0.0
  %v573 = vmax.f32 %v557, 0.0
  %v574 = vmax.f32 %v558, 0.0
  %v575 = vmax.f32 %v559, 0.0
  %v576 = vmax.f32 %v560, 0.0
  %v577 = vrot.slane %v269, 2
  %v578 = vrot.slane %v272, 2
  %v579 = vrot.slane %v277, 2
  %v580 = vrot.slane %v280, 2
  %v581 = vrot.slane %v285, 2
  %v582 = vrot.slane %v288, 2
  %v583 = vrot.slane %v293, 2
  %v584 = vrot.slane %v296, 2
  %v585 = vrot.slane %v301, 2
  %v586 = vrot.slane %v304, 2
  %v587 = vrot.slane %v309, 2
  %v588 = vrot.slane %v312, 2
  %v589 = vrot.slane %v317, 2
  %v590 = vrot.slane %v320, 2
  %v591 = vrot.slane %v325, 2
  %v592 = vrot.slane %v328, 2
  %593 = vrot.lane.b32.xlu0 %v577, 112
  %v594 = vpop.permute.xlu0 %593
  %595 = vrot.lane.b32.xlu0 %v578, 112
  %v596 = vpop.permute.xlu0 %595
  %597 = vrot.lane.b32.xlu0 %v579, 112
  %v598 = vpop.permute.xlu0 %597
  %599 = vrot.lane.b32.xlu0 %v580, 112
  %v600 = vpop.permute.xlu0 %599
  %601 = vrot.lane.b32.xlu0 %v581, 112
  %v602 = vpop.permute.xlu0 %601
  %603 = vrot.lane.b32.xlu0 %v582, 112
  %v604 = vpop.permute.xlu0 %603
  %605 = vrot.lane.b32.xlu0 %v583, 112
  %v606 = vpop.permute.xlu0 %605
  %607 = vrot.lane.b32.xlu0 %v584, 112
  %v608 = vpop.permute.xlu0 %607
  %609 = vrot.lane.b32.xlu0 %v585, 112
  %v610 = vpop.permute.xlu0 %609
  %611 = vrot.lane.b32.xlu0 %v586, 112
  %v612 = vpop.permute.xlu0 %611
  %613 = vrot.lane.b32.xlu0 %v587, 112
  %v614 = vpop.permute.xlu0 %613
  %615 = vrot.lane.b32.xlu0 %v588, 112
  %v616 = vpop.permute.xlu0 %615
  %617 = vrot.lane.b32.xlu0 %v589, 112
  %v618 = vpop.permute.xlu0 %617
  %619 = vrot.lane.b32.xlu0 %v590, 112
  %v620 = vpop.permute.xlu0 %619
  %621 = vrot.lane.b32.xlu0 %v591, 112
  %v622 = vpop.permute.xlu0 %621
  %623 = vrot.lane.b32.xlu0 %v592, 112
  %v624 = vpop.permute.xlu0 %623
  %v641 = vadd.f32 %v411, %v594
  %v642 = vadd.f32 %v412, %v596
  %v643 = vadd.f32 %v413, %v598
  %v644 = vadd.f32 %v414, %v600
  %v645 = vadd.f32 %v415, %v602
  %v646 = vadd.f32 %v416, %v604
  %v647 = vadd.f32 %v417, %v606
  %v648 = vadd.f32 %v418, %v608
  %v649 = vadd.f32 %v419, %v610
  %v650 = vadd.f32 %v420, %v612
  %v651 = vadd.f32 %v421, %v614
  %v652 = vadd.f32 %v422, %v616
  %v653 = vadd.f32 %v423, %v618
  %v654 = vadd.f32 %v424, %v620
  %v655 = vadd.f32 %v425, %v622
  %v656 = vadd.f32 %v426, %v624
  %vm657 = vcmask 193664
  %v658 = vsel %vm657, %v641, -inf
  %v659 = vrot.slane %v658, 4
  %v660 = vmax.f32 %v658, %v659
  %v661 = vrot.slane %v660, 2
  %v662 = vmax.f32 %v660, %v661
  %v663 = vrot.slane %v662, 1
  %v664 = vmax.f32 %v662, %v663
  %v665 = vsel %vm657, %v642, -inf
  %v666 = vrot.slane %v665, 4
  %v667 = vmax.f32 %v665, %v666
  %v668 = vrot.slane %v667, 2
  %v669 = vmax.f32 %v667, %v668
  %v670 = vrot.slane %v669, 1
  %v671 = vmax.f32 %v669, %v670
  %v672 = vsel %vm657, %v643, -inf
  %v673 = vrot.slane %v672, 4
  %v674 = vmax.f32 %v672, %v673
  %v675 = vrot.slane %v674, 2
  %v676 = vmax.f32 %v674, %v675
  %v677 = vrot.slane %v676, 1
  %v678 = vmax.f32 %v676, %v677
  %v679 = vsel %vm657, %v644, -inf
  %v680 = vrot.slane %v679, 4
  %v681 = vmax.f32 %v679, %v680
  %v682 = vrot.slane %v681, 2
  %v683 = vmax.f32 %v681, %v682
  %v684 = vrot.slane %v683, 1
  %v685 = vmax.f32 %v683, %v684
  %v686 = vsel %vm657, %v645, -inf
  %v687 = vrot.slane %v686, 4
  %v688 = vmax.f32 %v686, %v687
  %v689 = vrot.slane %v688, 2
  %v690 = vmax.f32 %v688, %v689
  %v691 = vrot.slane %v690, 1
  %v692 = vmax.f32 %v690, %v691
  %v693 = vsel %vm657, %v646, -inf
  %v694 = vrot.slane %v693, 4
  %v695 = vmax.f32 %v693, %v694
  %v696 = vrot.slane %v695, 2
  %v697 = vmax.f32 %v695, %v696
  %v698 = vrot.slane %v697, 1
  %v699 = vmax.f32 %v697, %v698
  %v700 = vsel %vm657, %v647, -inf
  %v701 = vrot.slane %v700, 4
  %v702 = vmax.f32 %v700, %v701
  %v703 = vrot.slane %v702, 2
  %v704 = vmax.f32 %v702, %v703
  %v705 = vrot.slane %v704, 1
  %v706 = vmax.f32 %v704, %v705
  %v707 = vsel %vm657, %v648, -inf
  %v708 = vrot.slane %v707, 4
  %v709 = vmax.f32 %v707, %v708
  %v710 = vrot.slane %v709, 2
  %v711 = vmax.f32 %v709, %v710
  %v712 = vrot.slane %v711, 1
  %v713 = vmax.f32 %v711, %v712
  %v714 = vsel %vm657, %v649, -inf
  %v715 = vrot.slane %v714, 4
  %v716 = vmax.f32 %v714, %v715
  %v717 = vrot.slane %v716, 2
  %v718 = vmax.f32 %v716, %v717
  %v719 = vrot.slane %v718, 1
  %v720 = vmax.f32 %v718, %v719
  %v721 = vsel %vm657, %v650, -inf
  %v722 = vrot.slane %v721, 4
  %v723 = vmax.f32 %v721, %v722
  %v724 = vrot.slane %v723, 2
  %v725 = vmax.f32 %v723, %v724
  %v726 = vrot.slane %v725, 1
  %v727 = vmax.f32 %v725, %v726
  %v728 = vsel %vm657, %v651, -inf
  %v729 = vrot.slane %v728, 4
  %v730 = vmax.f32 %v728, %v729
  %v731 = vrot.slane %v730, 2
  %v732 = vmax.f32 %v730, %v731
  %v733 = vrot.slane %v732, 1
  %v734 = vmax.f32 %v732, %v733
  %v735 = vsel %vm657, %v652, -inf
  %v736 = vrot.slane %v735, 4
  %v737 = vmax.f32 %v735, %v736
  %v738 = vrot.slane %v737, 2
  %v739 = vmax.f32 %v737, %v738
  %v740 = vrot.slane %v739, 1
  %v741 = vmax.f32 %v739, %v740
  %v742 = vsel %vm657, %v653, -inf
  %v743 = vrot.slane %v742, 4
  %v744 = vmax.f32 %v742, %v743
  %v745 = vrot.slane %v744, 2
  %v746 = vmax.f32 %v744, %v745
  %v747 = vrot.slane %v746, 1
  %v748 = vmax.f32 %v746, %v747
  %v749 = vsel %vm657, %v654, -inf
  %v750 = vrot.slane %v749, 4
  %v751 = vmax.f32 %v749, %v750
  %v752 = vrot.slane %v751, 2
  %v753 = vmax.f32 %v751, %v752
  %v754 = vrot.slane %v753, 1
  %v755 = vmax.f32 %v753, %v754
  %v756 = vsel %vm657, %v655, -inf
  %v757 = vrot.slane %v756, 4
  %v758 = vmax.f32 %v756, %v757
  %v759 = vrot.slane %v758, 2
  %v760 = vmax.f32 %v758, %v759
  %v761 = vrot.slane %v760, 1
  %v762 = vmax.f32 %v760, %v761
  %v763 = vsel %vm657, %v656, -inf
  %v764 = vrot.slane %v763, 4
  %v765 = vmax.f32 %v763, %v764
  %v766 = vrot.slane %v765, 2
  %v767 = vmax.f32 %v765, %v766
  %v768 = vrot.slane %v767, 1
  %v769 = vmax.f32 %v767, %v768
  %v770 = vld [vmem:[%s2 + $0x1] sm:$0x1]
  %v771 = vlaneseq
  %v772 = vshrl.u32 %v771, 7
  %v773 = vsub.s32 0, %v772
  %v774 = vrot.slane %v770, %v773
  %776 = vrot.lane.b32.xlu0 %v774, 16
  %v777 = vpop.permute.xlu0 %776
  %v779 = vadd.f32 %v664, %v777
  %v780 = vadd.f32 %v671, %v777
  %v781 = vadd.f32 %v678, %v777
  %v782 = vadd.f32 %v685, %v777
  %v783 = vadd.f32 %v692, %v777
  %v784 = vadd.f32 %v699, %v777
  %v785 = vadd.f32 %v706, %v777
  %v786 = vadd.f32 %v713, %v777
  %v787 = vadd.f32 %v720, %v777
  %v788 = vadd.f32 %v727, %v777
  %v789 = vadd.f32 %v734, %v777
  %v790 = vadd.f32 %v741, %v777
  %v791 = vadd.f32 %v748, %v777
  %v792 = vadd.f32 %v755, %v777
  %v793 = vadd.f32 %v762, %v777
  %v794 = vadd.f32 %v769, %v777
  %v795 = vmax.f32 %v779, 0.0
  %v796 = vmax.f32 %v780, 0.0
  %v797 = vmax.f32 %v781, 0.0
  %v798 = vmax.f32 %v782, 0.0
  %v799 = vmax.f32 %v783, 0.0
  %v800 = vmax.f32 %v784, 0.0
  %v801 = vmax.f32 %v785, 0.0
  %v802 = vmax.f32 %v786, 0.0
  %v803 = vmax.f32 %v787, 0.0
  %v804 = vmax.f32 %v788, 0.0
  %v805 = vmax.f32 %v789, 0.0
  %v806 = vmax.f32 %v790, 0.0
  %v807 = vmax.f32 %v791, 0.0
  %v808 = vmax.f32 %v792, 0.0
  %v809 = vmax.f32 %v793, 0.0
  %v810 = vmax.f32 %v794, 0.0
  %v811 = vrot.slane %v269, 3
  %v812 = vrot.slane %v272, 3
  %v813 = vrot.slane %v277, 3
  %v814 = vrot.slane %v280, 3
  %v815 = vrot.slane %v285, 3
  %v816 = vrot.slane %v288, 3
  %v817 = vrot.slane %v293, 3
  %v818 = vrot.slane %v296, 3
  %v819 = vrot.slane %v301, 3
  %v820 = vrot.slane %v304, 3
  %v821 = vrot.slane %v309, 3
  %v822 = vrot.slane %v312, 3
  %v823 = vrot.slane %v317, 3
  %v824 = vrot.slane %v320, 3
  %v825 = vrot.slane %v325, 3
  %v826 = vrot.slane %v328, 3
  %827 = vrot.lane.b32.xlu0 %v811, 104
  %v828 = vpop.permute.xlu0 %827
  %829 = vrot.lane.b32.xlu0 %v812, 104
  %v830 = vpop.permute.xlu0 %829
  %831 = vrot.lane.b32.xlu0 %v813, 104
  %v832 = vpop.permute.xlu0 %831
  %833 = vrot.lane.b32.xlu0 %v814, 104
  %v834 = vpop.permute.xlu0 %833
  %835 = vrot.lane.b32.xlu0 %v815, 104
  %v836 = vpop.permute.xlu0 %835
  %837 = vrot.lane.b32.xlu0 %v816, 104
  %v838 = vpop.permute.xlu0 %837
  %839 = vrot.lane.b32.xlu0 %v817, 104
  %v840 = vpop.permute.xlu0 %839
  %841 = vrot.lane.b32.xlu0 %v818, 104
  %v842 = vpop.permute.xlu0 %841
  %843 = vrot.lane.b32.xlu0 %v819, 104
  %v844 = vpop.permute.xlu0 %843
  %845 = vrot.lane.b32.xlu0 %v820, 104
  %v846 = vpop.permute.xlu0 %845
  %847 = vrot.lane.b32.xlu0 %v821, 104
  %v848 = vpop.permute.xlu0 %847
  %849 = vrot.lane.b32.xlu0 %v822, 104
  %v850 = vpop.permute.xlu0 %849
  %851 = vrot.lane.b32.xlu0 %v823, 104
  %v852 = vpop.permute.xlu0 %851
  %853 = vrot.lane.b32.xlu0 %v824, 104
  %v854 = vpop.permute.xlu0 %853
  %855 = vrot.lane.b32.xlu0 %v825, 104
  %v856 = vpop.permute.xlu0 %855
  %857 = vrot.lane.b32.xlu0 %v826, 104
  %v858 = vpop.permute.xlu0 %857
  %v875 = vadd.f32 %v641, %v828
  %v876 = vadd.f32 %v642, %v830
  %v877 = vadd.f32 %v643, %v832
  %v878 = vadd.f32 %v644, %v834
  %v879 = vadd.f32 %v645, %v836
  %v880 = vadd.f32 %v646, %v838
  %v881 = vadd.f32 %v647, %v840
  %v882 = vadd.f32 %v648, %v842
  %v883 = vadd.f32 %v649, %v844
  %v884 = vadd.f32 %v650, %v846
  %v885 = vadd.f32 %v651, %v848
  %v886 = vadd.f32 %v652, %v850
  %v887 = vadd.f32 %v653, %v852
  %v888 = vadd.f32 %v654, %v854
  %v889 = vadd.f32 %v655, %v856
  %v890 = vadd.f32 %v656, %v858
  %vm891 = vcmask 389440
  %v892 = vsel %vm891, %v875, -inf
  %v893 = vrot.slane %v892, 4
  %v894 = vmax.f32 %v892, %v893
  %v895 = vrot.slane %v894, 2
  %v896 = vmax.f32 %v894, %v895
  %v897 = vrot.slane %v896, 1
  %v898 = vmax.f32 %v896, %v897
  %v899 = vsel %vm891, %v876, -inf
  %v900 = vrot.slane %v899, 4
  %v901 = vmax.f32 %v899, %v900
  %v902 = vrot.slane %v901, 2
  %v903 = vmax.f32 %v901, %v902
  %v904 = vrot.slane %v903, 1
  %v905 = vmax.f32 %v903, %v904
  %v906 = vsel %vm891, %v877, -inf
  %v907 = vrot.slane %v906, 4
  %v908 = vmax.f32 %v906, %v907
  %v909 = vrot.slane %v908, 2
  %v910 = vmax.f32 %v908, %v909
  %v911 = vrot.slane %v910, 1
  %v912 = vmax.f32 %v910, %v911
  %v913 = vsel %vm891, %v878, -inf
  %v914 = vrot.slane %v913, 4
  %v915 = vmax.f32 %v913, %v914
  %v916 = vrot.slane %v915, 2
  %v917 = vmax.f32 %v915, %v916
  %v918 = vrot.slane %v917, 1
  %v919 = vmax.f32 %v917, %v918
  %v920 = vsel %vm891, %v879, -inf
  %v921 = vrot.slane %v920, 4
  %v922 = vmax.f32 %v920, %v921
  %v923 = vrot.slane %v922, 2
  %v924 = vmax.f32 %v922, %v923
  %v925 = vrot.slane %v924, 1
  %v926 = vmax.f32 %v924, %v925
  %v927 = vsel %vm891, %v880, -inf
  %v928 = vrot.slane %v927, 4
  %v929 = vmax.f32 %v927, %v928
  %v930 = vrot.slane %v929, 2
  %v931 = vmax.f32 %v929, %v930
  %v932 = vrot.slane %v931, 1
  %v933 = vmax.f32 %v931, %v932
  %v934 = vsel %vm891, %v881, -inf
  %v935 = vrot.slane %v934, 4
  %v936 = vmax.f32 %v934, %v935
  %v937 = vrot.slane %v936, 2
  %v938 = vmax.f32 %v936, %v937
  %v939 = vrot.slane %v938, 1
  %v940 = vmax.f32 %v938, %v939
  %v941 = vsel %vm891, %v882, -inf
  %v942 = vrot.slane %v941, 4
  %v943 = vmax.f32 %v941, %v942
  %v944 = vrot.slane %v943, 2
  %v945 = vmax.f32 %v943, %v944
  %v946 = vrot.slane %v945, 1
  %v947 = vmax.f32 %v945, %v946
  %v948 = vsel %vm891, %v883, -inf
  %v949 = vrot.slane %v948, 4
  %v950 = vmax.f32 %v948, %v949
  %v951 = vrot.slane %v950, 2
  %v952 = vmax.f32 %v950, %v951
  %v953 = vrot.slane %v952, 1
  %v954 = vmax.f32 %v952, %v953
  %v955 = vsel %vm891, %v884, -inf
  %v956 = vrot.slane %v955, 4
  %v957 = vmax.f32 %v955, %v956
  %v958 = vrot.slane %v957, 2
  %v959 = vmax.f32 %v957, %v958
  %v960 = vrot.slane %v959, 1
  %v961 = vmax.f32 %v959, %v960
  %v962 = vsel %vm891, %v885, -inf
  %v963 = vrot.slane %v962, 4
  %v964 = vmax.f32 %v962, %v963
  %v965 = vrot.slane %v964, 2
  %v966 = vmax.f32 %v964, %v965
  %v967 = vrot.slane %v966, 1
  %v968 = vmax.f32 %v966, %v967
  %v969 = vsel %vm891, %v886, -inf
  %v970 = vrot.slane %v969, 4
  %v971 = vmax.f32 %v969, %v970
  %v972 = vrot.slane %v971, 2
  %v973 = vmax.f32 %v971, %v972
  %v974 = vrot.slane %v973, 1
  %v975 = vmax.f32 %v973, %v974
  %v976 = vsel %vm891, %v887, -inf
  %v977 = vrot.slane %v976, 4
  %v978 = vmax.f32 %v976, %v977
  %v979 = vrot.slane %v978, 2
  %v980 = vmax.f32 %v978, %v979
  %v981 = vrot.slane %v980, 1
  %v982 = vmax.f32 %v980, %v981
  %v983 = vsel %vm891, %v888, -inf
  %v984 = vrot.slane %v983, 4
  %v985 = vmax.f32 %v983, %v984
  %v986 = vrot.slane %v985, 2
  %v987 = vmax.f32 %v985, %v986
  %v988 = vrot.slane %v987, 1
  %v989 = vmax.f32 %v987, %v988
  %v990 = vsel %vm891, %v889, -inf
  %v991 = vrot.slane %v990, 4
  %v992 = vmax.f32 %v990, %v991
  %v993 = vrot.slane %v992, 2
  %v994 = vmax.f32 %v992, %v993
  %v995 = vrot.slane %v994, 1
  %v996 = vmax.f32 %v994, %v995
  %v997 = vsel %vm891, %v890, -inf
  %v998 = vrot.slane %v997, 4
  %v999 = vmax.f32 %v997, %v998
  %v1000 = vrot.slane %v999, 2
  %v1001 = vmax.f32 %v999, %v1000
  %v1002 = vrot.slane %v1001, 1
  %v1003 = vmax.f32 %v1001, %v1002
  %v1004 = vld [vmem:[%s2 + $0x2] sm:$0x1]
  %v1005 = vlaneseq
  %v1006 = vshrl.u32 %v1005, 7
  %v1007 = vsub.s32 0, %v1006
  %v1008 = vrot.slane %v1004, %v1007
  %1010 = vrot.lane.b32.xlu0 %v1008, 40
  %v1011 = vpop.permute.xlu0 %1010
  %v1013 = vadd.f32 %v898, %v1011
  %v1014 = vadd.f32 %v905, %v1011
  %v1015 = vadd.f32 %v912, %v1011
  %v1016 = vadd.f32 %v919, %v1011
  %v1017 = vadd.f32 %v926, %v1011
  %v1018 = vadd.f32 %v933, %v1011
  %v1019 = vadd.f32 %v940, %v1011
  %v1020 = vadd.f32 %v947, %v1011
  %v1021 = vadd.f32 %v954, %v1011
  %v1022 = vadd.f32 %v961, %v1011
  %v1023 = vadd.f32 %v968, %v1011
  %v1024 = vadd.f32 %v975, %v1011
  %v1025 = vadd.f32 %v982, %v1011
  %v1026 = vadd.f32 %v989, %v1011
  %v1027 = vadd.f32 %v996, %v1011
  %v1028 = vadd.f32 %v1003, %v1011
  %v1029 = vmax.f32 %v1013, 0.0
  %v1030 = vmax.f32 %v1014, 0.0
  %v1031 = vmax.f32 %v1015, 0.0
  %v1032 = vmax.f32 %v1016, 0.0
  %v1033 = vmax.f32 %v1017, 0.0
  %v1034 = vmax.f32 %v1018, 0.0
  %v1035 = vmax.f32 %v1019, 0.0
  %v1036 = vmax.f32 %v1020, 0.0
  %v1037 = vmax.f32 %v1021, 0.0
  %v1038 = vmax.f32 %v1022, 0.0
  %v1039 = vmax.f32 %v1023, 0.0
  %v1040 = vmax.f32 %v1024, 0.0
  %v1041 = vmax.f32 %v1025, 0.0
  %v1042 = vmax.f32 %v1026, 0.0
  %v1043 = vmax.f32 %v1027, 0.0
  %v1044 = vmax.f32 %v1028, 0.0
  %v1061 = vrot.slane %v562, 7
  %vm1062 = vcmask 1041409
  %v1063 = vsel %vm1062, %v1061, %v561
  %v1064 = vrot.slane %v563, 6
  %vm1065 = vcmask 1042434
  %v1066 = vsel %vm1065, %v1064, %v1063
  %v1067 = vrot.slane %v564, 5
  %vm1068 = vcmask 1043459
  %v1069 = vsel %vm1068, %v1067, %v1066
  %v1070 = vrot.slane %v565, 4
  %vm1071 = vcmask 1044484
  %v1072 = vsel %vm1071, %v1070, %v1069
  %v1073 = vrot.slane %v566, 3
  %vm1074 = vcmask 1045509
  %v1075 = vsel %vm1074, %v1073, %v1072
  %v1076 = vrot.slane %v567, 2
  %vm1077 = vcmask 1046534
  %v1078 = vsel %vm1077, %v1076, %v1075
  %v1079 = vrot.slane %v568, 1
  %vm1080 = vcmask 1047559
  %v1081 = vsel %vm1080, %v1079, %v1078
  %v1082 = vrot.slane %v570, 7
  %v1083 = vsel %vm1062, %v1082, %v569
  %v1084 = vrot.slane %v571, 6
  %v1085 = vsel %vm1065, %v1084, %v1083
  %v1086 = vrot.slane %v572, 5
  %v1087 = vsel %vm1068, %v1086, %v1085
  %v1088 = vrot.slane %v573, 4
  %v1089 = vsel %vm1071, %v1088, %v1087
  %v1090 = vrot.slane %v574, 3
  %v1091 = vsel %vm1074, %v1090, %v1089
  %v1092 = vrot.slane %v575, 2
  %v1093 = vsel %vm1077, %v1092, %v1091
  %v1094 = vrot.slane %v576, 1
  %v1095 = vsel %vm1080, %v1094, %v1093
  %v1114 = vrot.slane %v796, 7
  %v1115 = vsel %vm1062, %v1114, %v795
  %v1116 = vrot.slane %v797, 6
  %v1117 = vsel %vm1065, %v1116, %v1115
  %v1118 = vrot.slane %v798, 5
  %v1119 = vsel %vm1068, %v1118, %v1117
  %v1120 = vrot.slane %v799, 4
  %v1121 = vsel %vm1071, %v1120, %v1119
  %v1122 = vrot.slane %v800, 3
  %v1123 = vsel %vm1074, %v1122, %v1121
  %v1124 = vrot.slane %v801, 2
  %v1125 = vsel %vm1077, %v1124, %v1123
  %v1126 = vrot.slane %v802, 1
  %v1127 = vsel %vm1080, %v1126, %v1125
  %v1128 = vrot.slane %v804, 7
  %v1129 = vsel %vm1062, %v1128, %v803
  %v1130 = vrot.slane %v805, 6
  %v1131 = vsel %vm1065, %v1130, %v1129
  %v1132 = vrot.slane %v806, 5
  %v1133 = vsel %vm1068, %v1132, %v1131
  %v1134 = vrot.slane %v807, 4
  %v1135 = vsel %vm1071, %v1134, %v1133
  %v1136 = vrot.slane %v808, 3
  %v1137 = vsel %vm1074, %v1136, %v1135
  %v1138 = vrot.slane %v809, 2
  %v1139 = vsel %vm1077, %v1138, %v1137
  %v1140 = vrot.slane %v810, 1
  %v1141 = vsel %vm1080, %v1140, %v1139
  %1142 = vrot.lane.b32.xlu0 %v1127, 120
  %v1143 = vpop.permute.xlu0 %1142
  %1144 = vrot.lane.b32.xlu0 %v1141, 120
  %v1145 = vpop.permute.xlu0 %1144
  %v1164 = vrot.slane %v1030, 7
  %v1165 = vsel %vm1062, %v1164, %v1029
  %v1166 = vrot.slane %v1031, 6
  %v1167 = vsel %vm1065, %v1166, %v1165
  %v1168 = vrot.slane %v1032, 5
  %v1169 = vsel %vm1068, %v1168, %v1167
  %v1170 = vrot.slane %v1033, 4
  %v1171 = vsel %vm1071, %v1170, %v1169
  %v1172 = vrot.slane %v1034, 3
  %v1173 = vsel %vm1074, %v1172, %v1171
  %v1174 = vrot.slane %v1035, 2
  %v1175 = vsel %vm1077, %v1174, %v1173
  %v1176 = vrot.slane %v1036, 1
  %v1177 = vsel %vm1080, %v1176, %v1175
  %v1178 = vrot.slane %v1038, 7
  %v1179 = vsel %vm1062, %v1178, %v1037
  %v1180 = vrot.slane %v1039, 6
  %v1181 = vsel %vm1065, %v1180, %v1179
  %v1182 = vrot.slane %v1040, 5
  %v1183 = vsel %vm1068, %v1182, %v1181
  %v1184 = vrot.slane %v1041, 4
  %v1185 = vsel %vm1071, %v1184, %v1183
  %v1186 = vrot.slane %v1042, 3
  %v1187 = vsel %vm1074, %v1186, %v1185
  %v1188 = vrot.slane %v1043, 2
  %v1189 = vsel %vm1077, %v1188, %v1187
  %v1190 = vrot.slane %v1044, 1
  %v1191 = vsel %vm1080, %v1190, %v1189
  %1192 = vrot.lane.b32.xlu0 %v1177, 104
  %v1193 = vpop.permute.xlu0 %1192
  %1194 = vrot.lane.b32.xlu0 %v1191, 104
  %v1195 = vpop.permute.xlu0 %1194
  %vm1198 = vcmask 64512
  %v1199 = vsel %vm1198, %v1081, %v1143
  %v1200 = vsel %vm1198, %v1095, %v1145
  %vm1201 = vcmask 130048
  %v1202 = vsel %vm1201, %v1199, %v1193
  %v1203 = vsel %vm1201, %v1200, %v1195
  %v1204 = vld [vmem:[%s3] sm:$0xff]
  %v1205 = vld [vmem:[%s3 + $0x8] sm:$0xff]
  %v1206 = vld [vmem:[%s3 + $0x10] sm:$0xff]
  %v1207 = vld [vmem:[%s4] sm:$0x1]
  %v1209 = vlaneseq
  %v1210 = vshrl.u32 %v1209, 7
  %v1211 = vsub.s32 0, %v1210
  %v1212 = vrot.slane %v1207, %v1211
  %vm1214 = vcmask 195584
  %v1216 = vsel %vm1214, %v1202, 0
  %v1219 = vsel %vm1214, %v1203, 0
  %1221 = vmatprep.subr.mxu0 0.0
  %1222 = vmatpush1.msra.mxu0 0.0
  %1223 = vmatprep.subr.mxu0 0.0
  %1224 = vmatpush1.msra.mxu0 0.0
  %1225 = vmatprep.subr.mxu0 0.0
  %1226 = vmatpush1.msra.mxu0 0.0
  %1227 = vmatprep.subr.mxu0 0.0
  %1228 = vmatpush1.msra.mxu0 0.0
  %1229 = vmatprep.subr.mxu0 0.0
  %1230 = vmatpush1.msra.mxu0 0.0
  %1231 = vmatprep.subr.mxu0 0.0
  %1232 = vmatpush1.msra.mxu0 0.0
  %1233 = vmatprep.subr.mxu0 0.0
  %1234 = vmatpush1.msra.mxu0 0.0
  %1235 = vmatprep.subr.mxu0 0.0
  %1236 = vmatpush1.msra.mxu0 0.0
  %1237 = vmatprep.subr.mxu0 0.0
  %1238 = vmatpush1.msra.mxu0 0.0
  %1239 = vmatprep.subr.mxu0 0.0
  %1240 = vmatpush1.msra.mxu0 0.0
  %1241 = vmatprep.subr.mxu0 0.0
  %1242 = vmatpush1.msra.mxu0 0.0
  %1243 = vmatprep.subr.mxu0 0.0
  %1244 = vmatpush1.msra.mxu0 0.0
  %1245 = vmatprep.subr.mxu0 0.0
  %1246 = vmatpush1.msra.mxu0 0.0
  %1247 = vmatprep.subr.mxu0 0.0
  %1248 = vmatpush1.msra.mxu0 %v1206
  %1249 = vmatprep.subr.mxu0 0.0
  %1250 = vmatpush1.msra.mxu0 %v1205
  %1251 = vmatprep.subr.mxu0 0.0
  %1252 = vmatpush1.msra.mxu0 %v1204
  %1253 = vmatprep.subr.mxu0 0.0
  %1254 = vmatpush2.msra.mxu0 0.0
  %1255 = vmatprep.subr.mxu0 0.0
  %1256 = vmatpush2.msra.mxu0 0.0
  %1257 = vmatprep.subr.mxu0 0.0
  %1258 = vmatpush2.msra.mxu0 0.0
  %1259 = vmatprep.subr.mxu0 0.0
  %1260 = vmatpush2.msra.mxu0 0.0
  %1261 = vmatprep.subr.mxu0 0.0
  %1262 = vmatpush2.msra.mxu0 0.0
  %1263 = vmatprep.subr.mxu0 0.0
  %1264 = vmatpush2.msra.mxu0 0.0
  %1265 = vmatprep.subr.mxu0 0.0
  %1266 = vmatpush2.msra.mxu0 0.0
  %1267 = vmatprep.subr.mxu0 0.0
  %1268 = vmatpush2.msra.mxu0 0.0
  %1269 = vmatprep.subr.mxu0 0.0
  %1270 = vmatpush2.msra.mxu0 0.0
  %1271 = vmatprep.subr.mxu0 0.0
  %1272 = vmatpush2.msra.mxu0 0.0
  %1273 = vmatprep.subr.mxu0 0.0
  %1274 = vmatpush2.msra.mxu0 0.0
  %1275 = vmatprep.subr.mxu0 0.0
  %1276 = vmatpush2.msra.mxu0 0.0
  %1277 = vmatprep.subr.mxu0 0.0
  %1278 = vmatpush2.msra.mxu0 0.0
  %1279 = vmatprep.subr.mxu0 0.0
  %1280 = vmatpush2.msra.mxu0 0.0
  %1281 = vmatprep.subr.mxu0 0.0
  %1282 = vmatpush2.msra.mxu0 0.0
  %1283 = vmatprep.subr.mxu0 0.0
  %1284 = vmatpush2.msra.mxu0 0.0
  %1285 = vmatprep.mubr.f32.mxu0 0.0
  %1286 = vmatmul.mubr.f32.gmra.mxu0 %v1216
  %v1287 = vpop.f32.mrf.mxu0
  %v1288 = vadd.f32 %v1212, %v1287
  %v1289 = vpop.f32.mrf.mxu0
  %1290 = vmatprep.mubr.f32.mxu0 0.0
  %1291 = vmatmul.mubr.f32.gmra.mxu0 %v1219
  %v1292 = vpop.f32.mrf.mxu0
  %v1293 = vadd.f32 %v1212, %v1292
  %v1294 = vpop.f32.mrf.mxu0
  %1295 = vdwg.mxu0
  %1296 = vst [vmem:[%s5] sm:$0xff] %v1288
  %1297 = vst [vmem:[%s5 + $0x8] sm:$0xff] %v1293
  // Predicated region
  $region22: #{motif_type_cnn_forward.1} parent=0 // pred_check
    _
  $region23: #{motif_type_cnn_forward.1} parent=0 // pred_check_branch
    %1299 = sbr.rel (0) target = $region25
  $region24: #{motif_type_cnn_forward.1} parent=0 // pred_region
    _
  $region25: #{motif_type_cnn_forward.1} parent=0 // pred_fallthru
    _
  // Predicated region
  $region26: #{motif_type_cnn_forward.1} parent=0 // pred_check
    _
  $region27: #{motif_type_cnn_forward.1} parent=0 // pred_check_branch
    %1301 = sbr.rel (0) target = $region29
  $region28: #{motif_type_cnn_forward.1} parent=0 // pred_region
    _
  $region29: #{motif_type_cnn_forward.1} parent=0 // pred_fallthru
    _

</llo_original>
